<compile_context>
chip_gen: v5e
topology: v5e:2x2
jax: 0.10.0
libtpu: 0.0.40
codegen_flags: <defaults>
</compile_context>

<pallas_src>
import numpy as np
import jax
import jax.numpy as jnp
from jax.experimental import pallas as pl
from jax.experimental.pallas import tpu as pltpu


def _scale_kernel(x_ref, w_ref, b_ref, o_ref):
    # x_ref: (tr, tc)   w_ref/b_ref: (tr, 1)  -> broadcast along lanes.
    o_ref[...] = (x_ref[...] * w_ref[...] + b_ref[...]).astype(o_ref.dtype)


def _pick_tile(dim: int, align: int, target: int) -> int:
    """Largest tile <= target that is a multiple of `align` and divides `dim`.
    Falls back to the full dim when `dim` is not aligned (allowed by TPU
    tiling rules: block dim == full array dim)."""
    if dim % align != 0 or dim <= align:
        return dim
    t = min(target, dim)
    t = (t // align) * align
    while dim % t != 0:
        t -= align
    return max(t, align)


def scale(x: jax.Array, weight: jax.Array, bias: jax.Array,
          *, row_tile: int = 256, col_tile: int = 512) -> jax.Array:
    """Pallas equivalent of Scale.forward: x * w[c] + b[c] over NCHW x."""
    nB, nC, nH, nW = x.shape
    rows = nB * nC
    cols = nH * nW

    # Free, metadata-only reshape to a lane-dense 2-D slab.
    x2 = jnp.reshape(x, (rows, cols))
    # One scalar per (batch, channel) row; tiny arrays, negligible traffic.
    w_rows = jnp.reshape(jnp.tile(weight.astype(x.dtype), nB), (rows, 1))
    b_rows = jnp.reshape(jnp.tile(bias.astype(x.dtype), nB), (rows, 1))

    tr = _pick_tile(rows, 8, row_tile)
    tc = _pick_tile(cols, 128, col_tile)
    grid = (pl.cdiv(rows, tr), pl.cdiv(cols, tc))

    out2 = pl.pallas_call(
        _scale_kernel,
        out_shape=jax.ShapeDtypeStruct((rows, cols), x.dtype),
        grid=grid,
        in_specs=[
            pl.BlockSpec((tr, tc), lambda i, j: (i, j)),
            pl.BlockSpec((tr, 1), lambda i, j: (i, 0)),
            pl.BlockSpec((tr, 1), lambda i, j: (i, 0)),
        ],
        out_specs=pl.BlockSpec((tr, tc), lambda i, j: (i, j)),
        compiler_params=pltpu.CompilerParams(
            dimension_semantics=("parallel", "parallel")),
    )(x2, w_rows, b_rows)

    # Free view back to NCHW for the consumer.
    return jnp.reshape(out2, (nB, nC, nH, nW))


if __name__ == "__main__":
    key = jax.random.PRNGKey(0)
    k1, k2, k3 = jax.random.split(key, 3)

    nB, nC, nH, nW = 2, 4, 16, 16
    x = jax.random.normal(k1, (nB, nC, nH, nW), dtype=jnp.float32)
    weight = jax.random.normal(k2, (nC,), dtype=jnp.float32)
    bias = jax.random.normal(k3, (nC,), dtype=jnp.float32)

    y = scale(x, weight, bias)
    jax.block_until_ready(y)

    # Reference: x * w.view(1,C,1,1) + b.view(1,C,1,1)
    ref = x * weight.reshape(1, nC, 1, 1) + bias.reshape(1, nC, 1, 1)

    assert y.shape == x.shape
    assert y.dtype == x.dtype
    np.testing.assert_allclose(np.asarray(y), np.asarray(ref),
                               rtol=1e-6, atol=1e-6)

    print("KERNEL_OK")
</pallas_src>

<mosaic_0001>
module attributes {stable_mosaic.version = 11 : i64} {
  func.func @_scale_kernel(%arg0: i32, %arg1: i32, %arg2: memref<8x256xf32, #tpu.memory_space<vmem>>, %arg3: memref<8x1xf32, #tpu.memory_space<vmem>>, %arg4: memref<8x1xf32, #tpu.memory_space<vmem>>, %arg5: memref<8x256xf32, #tpu.memory_space<vmem>>) attributes {dimension_semantics = [#tpu.dimension_semantics<parallel>, #tpu.dimension_semantics<parallel>], iteration_bounds = array<i64: 1, 1>, scalar_prefetch = 0 : i64, scratch_operands = 0 : i64, tpu.core_type = #tpu.core_type<tc>, window_params = [{transform_indices = @transform_0, window_bounds = array<i64: 8, 256>}, {transform_indices = @transform_1, window_bounds = array<i64: 8, 1>}, {transform_indices = @transform_2, window_bounds = array<i64: 8, 1>}, {transform_indices = @transform_3, window_bounds = array<i64: 8, 256>}]} {
    %c0 = arith.constant 0 : index
    %c0_0 = arith.constant 0 : index
    %0 = vector.load %arg2[%c0, %c0_0] : memref<8x256xf32, #tpu.memory_space<vmem>>, vector<8x256xf32>
    %c0_1 = arith.constant 0 : index
    %c0_2 = arith.constant 0 : index
    %1 = vector.load %arg3[%c0_1, %c0_2] : memref<8x1xf32, #tpu.memory_space<vmem>>, vector<8x1xf32>
    %2 = vector.broadcast %1 : vector<8x1xf32> to vector<8x256xf32>
    %3 = arith.mulf %0, %2 : vector<8x256xf32>
    %c0_3 = arith.constant 0 : index
    %c0_4 = arith.constant 0 : index
    %4 = vector.load %arg4[%c0_3, %c0_4] : memref<8x1xf32, #tpu.memory_space<vmem>>, vector<8x1xf32>
    %5 = vector.broadcast %4 : vector<8x1xf32> to vector<8x256xf32>
    %6 = arith.addf %3, %5 : vector<8x256xf32>
    %c0_5 = arith.constant 0 : index
    %c0_6 = arith.constant 0 : index
    %7 = vector.load %arg5[%c0_5, %c0_6] : memref<8x256xf32, #tpu.memory_space<vmem>>, vector<8x256xf32>
    tpu.vector_store %arg5[%c0_5, %c0_6], %6 {strides = array<i32>} : memref<8x256xf32, #tpu.memory_space<vmem>>, vector<8x256xf32>,
    return
  }
  func.func @transform_0(%arg0: i32, %arg1: i32) -> (i32, i32) {
    %c0_i32 = arith.constant 0 : i32
    return %arg0, %arg1 : i32, i32
  }
  func.func @transform_1(%arg0: i32, %arg1: i32) -> (i32, i32) {
    %c0_i32 = arith.constant 0 : i32
    %c0_i32_0 = arith.constant 0 : i32
    return %arg0, %c0_i32 : i32, i32
  }
  func.func @transform_2(%arg0: i32, %arg1: i32) -> (i32, i32) {
    %c0_i32 = arith.constant 0 : i32
    %c0_i32_0 = arith.constant 0 : i32
    return %arg0, %c0_i32 : i32, i32
  }
  func.func @transform_3(%arg0: i32, %arg1: i32) -> (i32, i32) {
    %c0_i32 = arith.constant 0 : i32
    return %arg0, %arg1 : i32, i32
  }
}

</mosaic_0001>

<llo_original>
// kernel: tpu_custom_call.1
$region0: #{tpu_custom_call.1}
  #allocation0 [shape = 'u32[]', space=smem, size = 0x4, offset = 0x4, fixed_abs, tag = 'smem constant byte address 0x4 - core index']
  #allocation1 [shape = 'u32[72,128]{1,0:T(1,128)}', space=vmem, size = 0x9000, scoped, tag = 'internal scratch']
  %s0 = inlined_call_operand.vmem [shape: f32[8,256], index: 0, kind: input, shape index: {}]
  %s1 = inlined_call_operand.vmem [shape: f32[8,1], index: 1, kind: input, shape index: {}]
  %s2 = inlined_call_operand.vmem [shape: f32[8,1], index: 2, kind: input, shape index: {}]
  %s3 = inlined_call_operand.hbm [shape: f32[8,256], index: 3, kind: output, shape index: {}]
  %s4 = sld [smem:[#allocation0]]
  $region22: #{tpu_custom_call.1} parent=0
    _
  %s6 = ssub.s32 1, %s4
  %s7 = scalar_select 0, %s6, %s4
  $region1: #{tpu_custom_call.1} parent=0
    #allocation2 [shape = 'u8[8192]{0}', space=vmem, size = 0x2000, scoped, tag = 'output window, operand 0, single buffered']
    #allocation3 [shape = 's32[1]{0}', space=sflag, size = 0x4, scoped, tag = 'scoped memory for tpu_custom_call.1']
    %8 = vsyncpa [#allocation3], 0
    // Predicated region
    $region2: #{tpu_custom_call.1} parent=1 // pred_check
      _
    $region3: #{tpu_custom_call.1} parent=1 // pred_check_branch
      %10 = sbr.rel (0) target = $region5
    $region4: #{tpu_custom_call.1} parent=1 // pred_region
      _
    $region5: #{tpu_custom_call.1} parent=1 // pred_fallthru
      _
    // Predicated region
    $region6: #{tpu_custom_call.1} parent=1 // pred_check
      _
    $region7: #{tpu_custom_call.1} parent=1 // pred_check_branch
      %12 = sbr.rel (0) target = $region9
    $region8: #{tpu_custom_call.1} parent=1 // pred_region
      _
    $region9: #{tpu_custom_call.1} parent=1 // pred_fallthru
      _
    // Predicated region
    $region10: #{tpu_custom_call.1} parent=1 // pred_check
      _
    $region11: #{tpu_custom_call.1} parent=1 // pred_check_branch
      %14 = sbr.rel (0) target = $region13
    $region12: #{tpu_custom_call.1} parent=1 // pred_region
      _
    $region13: #{tpu_custom_call.1} parent=1 // pred_fallthru
      _
    %v15 = vld [vmem:[%s0] sm:$0xff]
    %v16 = vld [vmem:[%s0 + $0x8] sm:$0xff]
    %v17 = vld [vmem:[%s1] sm:$0xff]
    %19 = vset.pattern.permute.xlu0 0
    %20 = vperm.xlu0 %19, %v17
    %v21 = vpop.permute.xlu0 %20
    %v23 = vmul.f32 %v15, %v21
    %v24 = vmul.f32 %v16, %v21
    %v25 = vld [vmem:[%s2] sm:$0xff]
    %27 = vset.pattern.permute.xlu0 0
    %28 = vperm.xlu0 %27, %v25
    %v29 = vpop.permute.xlu0 %28
    %v31 = vadd.f32 %v23, %v29
    %v32 = vadd.f32 %v24, %v29
    %33 = vst [vmem:[#allocation2] sm:$0xff] %v31
    %34 = vst [vmem:[#allocation2 + $0x8] sm:$0xff] %v32
    // Predicated region
    $region14: #{tpu_custom_call.1} parent=1 // pred_check
      _
    $region15: #{tpu_custom_call.1} parent=1 // pred_check_branch
      %36 = sbr.rel (0) target = $region17
    $region16: #{tpu_custom_call.1} parent=1 // pred_region
      %38 = vsyncadd [#allocation3], 0
      %s40 = sshll.u32 [#allocation2], 4
      %s41 = int_to_ptr.vmem [resolvable:$true] %s40
      %s42 = sshll.u32 %s3, 4
      %s43 = int_to_ptr.hbm [resolvable:$true] %s42
      %45 = dma.vmem_to_hbm [thread:$0]  %s41, 256, %s43, [#allocation3]
    $region17: #{tpu_custom_call.1} parent=1 // pred_fallthru
      _
    // Predicated region
    $region18: #{tpu_custom_call.1} parent=1 // pred_check
      _
    $region19: #{tpu_custom_call.1} parent=1 // pred_check_branch
      %47 = sbr.rel (0) target = $region21
    $region20: #{tpu_custom_call.1} parent=1 // pred_region
      %49 = dma.done [#allocation3], 256
    $region21: #{tpu_custom_call.1} parent=1 // pred_fallthru
      _
    %50 = vsyncpa [#allocation3], 1

</llo_original>
